<compile_context>
chip_gen: v5e
topology: v5e:2x2
jax: 0.10.0
libtpu: 0.0.40
codegen_flags: <defaults>
</compile_context>

<pallas_src>
import functools
import math

import jax
import jax.numpy as jnp
from jax.experimental import pallas as pl
from jax.experimental.pallas import tpu as pltpu


# --------------------------------------------------------------------------------------
# Pallas kernel: grouped im2col matmul (MXU), canonical (M,K)x(K,N) orientation.
# --------------------------------------------------------------------------------------
def _deform_conv_kernel(w_ref, v_ref, o_ref):
    # w_ref: (KC, Co_gp) bf16 | v_ref: (TP, KC) bf16 | o_ref: (TP, Co_gp) f32
    o_ref[...] = jnp.dot(v_ref[...], w_ref[...],
                         preferred_element_type=jnp.float32)


def _vmem_capacity_bytes():
    """Per-TensorCore VMEM capacity; clamps to 64 MiB on v7x, 128 MiB otherwise."""
    kind = ""
    try:
        kind = jax.devices()[0].device_kind.lower()
    except Exception:
        pass
    is_v7 = ("v7" in kind) or ("7x" in kind)
    if is_v7:
        per_core_max = 64 * 1024 * 1024          # v7x: 64 MiB per TensorCore
    elif kind:
        per_core_max = 128 * 1024 * 1024         # v4/v5e/v6e: 128 MiB per core
    else:
        per_core_max = 64 * 1024 * 1024          # unknown chip: be conservative
    cap = None
    try:
        cap = int(pltpu.get_tpu_info().vmem_capacity_bytes)
    except Exception:
        cap = None
    if cap is None or cap <= 0:
        cap = per_core_max
    return min(cap, per_core_max)


def _pick_p_tile(P_al, KC, Co_gp, vmem_cap):
    """Largest 128-multiple P tile that keeps double-buffering within the VMEM budget."""
    budget = int(vmem_cap * 0.65)                # review opt 6: less conservative budget
    per_lane = 2 * KC * 2                        # cols: bf16, double-buffered
    per_lane += 2 * Co_gp * 4                    # out:  f32,  double-buffered
    fixed = 2 * KC * Co_gp * 2                   # weight: bf16 (counted double-buffered)
    fixed += 2 * 1024 * 1024                     # compiler / MXU staging headroom
    avail = max(budget - fixed, per_lane * 128)
    tp = (avail // per_lane) // 128 * 128
    tp = int(max(128, min(tp, 2048)))
    return min(tp, P_al)


@functools.partial(
    jax.jit,
    static_argnames=("stride", "padding", "dilation", "groups",
                     "deformable_groups", "p_tile"))
def deform_conv_forward(x, offset, weight, stride=(1, 1), padding=(0, 0),
                        dilation=(1, 1), groups=1, deformable_groups=1,
                        p_tile=None):
    sh, sw = stride
    ph, pw = padding
    dh, dw = dilation
    C_out, Ci_g, KH, KW = weight.shape
    N, C_in, H, W = x.shape
    assert C_in == Ci_g * groups
    K = KH * KW

    # Replicate the module's "input smaller than kernel" pad / crop path.
    pad_h = max(KH - H, 0)
    pad_w = max(KW - W, 0)
    input_pad = pad_h > 0 or pad_w > 0
    if input_pad:
        x = jnp.pad(x, ((0, 0), (0, 0), (0, pad_h), (0, pad_w)))
        offset = jnp.pad(offset, ((0, 0), (0, 0), (0, pad_h), (0, pad_w)))
        H += pad_h
        W += pad_w

    Ho = (H + 2 * ph - (dh * (KH - 1) + 1)) // sh + 1
    Wo = (W + 2 * pw - (dw * (KW - 1) + 1)) // sw + 1
    assert Ho > 0 and Wo > 0, "convolution input is too small"
    P = Ho * Wo
    DG = deformable_groups
    assert offset.shape == (N, 2 * DG * K, Ho, Wo), offset.shape
    Cdg = C_in // DG

    G = groups
    Co_g = C_out // G
    KC = Ci_g * K
    Co_gp = ((Co_g + 15) // 16) * 16        # bf16 sublane-pair alignment (review opt 8)

    # Lane alignment only (<=127 extra rows, skipped when already aligned); the grid
    # itself uses cdiv so there is no tile-sized pad copy (review opt 5).
    P_al = ((P + 127) // 128) * 128

    vmem_cap = _vmem_capacity_bytes()
    tp = int(p_tile) if p_tile is not None else _pick_p_tile(P_al, KC, Co_gp, vmem_cap)
    tp = min(tp, P_al)
    assert tp % 128 == 0 and tp > 0
    pt = (P_al + tp - 1) // tp              # ragged last tile handled by Pallas

    # ------------- plain-JAX glue: sampling positions + fused row-gather im2col --------
    # offset channel layout (per deformable group): [k][0=dy, 1=dx]   (mmcv ordering)
    off = offset.reshape(N, DG, K, 2, Ho, Wo).astype(jnp.float32)
    off_y, off_x = off[:, :, :, 0], off[:, :, :, 1]          # (N, DG, K, Ho, Wo)

    ki = jnp.arange(KH, dtype=jnp.float32)
    kj = jnp.arange(KW, dtype=jnp.float32)
    h_base = jnp.arange(Ho, dtype=jnp.float32)[None, :] * sh - ph + (ki * dh)[:, None]
    w_base = jnp.arange(Wo, dtype=jnp.float32)[None, :] * sw - pw + (kj * dw)[:, None]
    h_base = jnp.repeat(h_base, KW, axis=0)                  # (K, Ho), k = i*KW + j
    w_base = jnp.tile(w_base, (KH, 1))                       # (K, Wo)

    h_im = h_base[None, None, :, :, None] + off_y            # (N, DG, K, Ho, Wo)
    w_im = w_base[None, None, :, None, :] + off_x

    # -> (N, DG, P, K): minor order (p, k) matches the channels-last row gather below.
    h_im = h_im.reshape(N, DG, K, P).transpose(0, 1, 3, 2)
    w_im = w_im.reshape(N, DG, K, P).transpose(0, 1, 3, 2)

    in_range = (h_im > -1.0) & (w_im > -1.0) & (h_im < H) & (w_im < W)

    h_low = jnp.floor(h_im)
    w_low = jnp.floor(w_im)
    lh = h_im - h_low
    lw = w_im - w_low
    hh = 1.0 - lh
    hw = 1.0 - lw
    h_low_i = h_low.astype(jnp.int32)
    w_low_i = w_low.astype(jnp.int32)
    h_high_i = h_low_i + 1
    w_high_i = w_low_i + 1

    corners = [
        (h_low_i,  w_low_i,  hh * hw),
        (h_low_i,  w_high_i, hh * lw),
        (h_high_i, w_low_i,  lh * hw),
        (h_high_i, w_high_i, lh * lw),
    ]

    # Channels-last row-gather operand: one contiguous Cdg vector per sample index
    # (gather-friendly on TPU: slice_sizes = (1, Cdg)).                  (review opt 9)
    x_rows = x.reshape(N, DG, Cdg, H * W).transpose(0, 1, 3, 2)
    x_rows = x_rows.reshape(N * DG * H * W, Cdg).astype(jnp.float32)
    base = (jnp.arange(N * DG, dtype=jnp.int32) * (H * W)).reshape(N, DG, 1, 1)

    # The 4 coefficient*validity-weighted corner rows are gathered, scaled and summed
    # in f32, then cast to bf16 ONCE (review opt 1).  XLA fuses the scale/sum with the
    # gathers so only the final bf16 im2col tensor is written to HBM.
    acc = jnp.zeros((N, DG, P, K, Cdg), jnp.float32)
    for hi, wi, wgt in corners:
        valid = in_range & (hi >= 0) & (hi <= H - 1) & (wi >= 0) & (wi <= W - 1)
        rows = jnp.clip(hi, 0, H - 1) * W + jnp.clip(wi, 0, W - 1)   # (N, DG, P, K)
        v = jnp.take(x_rows, base + rows, axis=0, mode="clip")      # (N, DG, P, K, Cdg)
        coef = jnp.where(valid, wgt, 0.0)[..., None]
        acc = acc + v * coef
    cols = acc.astype(jnp.bfloat16)                                  # single rounding

    # -> (N, G, P, KC) with KC ordered (k, ci).  Free reshape when DG == G (incl. 1/1).
    if DG == G:
        cols = cols.reshape(N, G, P, KC)
    else:
        cols = cols.transpose(0, 2, 3, 1, 4).reshape(N, P, K, G, Ci_g)
        cols = cols.transpose(0, 3, 1, 2, 4).reshape(N, G, P, KC)
    if P_al != P:
        cols = jnp.pad(cols, ((0, 0), (0, 0), (0, P_al - P), (0, 0)))

    # Weight: (C_out, Ci_g, KH, KW) -> (G, KC, Co_gp), KC ordered (k, ci) to match cols.
    w_kc = weight.reshape(G, Co_g, Ci_g, K).transpose(0, 1, 3, 2).reshape(G, Co_g, KC)
    w_kc = jnp.swapaxes(w_kc, 1, 2)                                  # (G, KC, Co_g)
    if Co_gp != Co_g:
        w_kc = jnp.pad(w_kc, ((0, 0), (0, 0), (0, Co_gp - Co_g)))
    w_kc = w_kc.astype(jnp.bfloat16)

    # ------------- Pallas kernel: grouped im2col matmul ---------------------------------
    # Grid (G, N, P_tiles): weight index constant along the inner axes (re-DMA'd only G
    # times); N / P_tiles give >=2 parallel iterations so both v7x TensorCores get work.
    vmem_limit = int(min(max(int(vmem_cap * 0.85), 32 * 1024 * 1024),
                         110 * 1024 * 1024))                         # v7x: ~54 MiB

    out = pl.pallas_call(
        _deform_conv_kernel,
        out_shape=jax.ShapeDtypeStruct((N, G, P_al, Co_gp), jnp.float32),
        grid_spec=pltpu.PrefetchScalarGridSpec(
            num_scalar_prefetch=0,
            grid=(G, N, pt),
            in_specs=[
                pl.BlockSpec((pl.Squeezed(), KC, Co_gp),
                             lambda g, n, t: (g, 0, 0)),
                pl.BlockSpec((pl.Squeezed(), pl.Squeezed(), tp, KC),
                             lambda g, n, t: (n, g, t, 0)),
            ],
            out_specs=pl.BlockSpec((pl.Squeezed(), pl.Squeezed(), tp, Co_gp),
                                   lambda g, n, t: (n, g, t, 0)),
        ),
        compiler_params=pltpu.CompilerParams(
            dimension_semantics=("parallel", "parallel", "parallel"),
            vmem_limit_bytes=vmem_limit),
    )(w_kc, cols)

    # Crop pads, transpose the (small) output back to NCHW.
    out = out[:, :, :P, :Co_g]                                       # (N, G, P, Co_g)
    out = jnp.transpose(out, (0, 1, 3, 2)).reshape(N, C_out, Ho, Wo).astype(x.dtype)
    if input_pad:
        out = out[:, :, :Ho - pad_h, :Wo - pad_w]
    return out


class DeformConvPallas:
    """Mirrors DeformConv.__init__ / forward (bias=False)."""

    def __init__(self, in_channels, out_channels, kernel_size, stride=1,
                 padding=0, dilation=1, groups=1, deformable_groups=1, key=None):
        to_pair = lambda v: (v, v) if isinstance(v, int) else tuple(v)
        self.in_channels = in_channels
        self.out_channels = out_channels
        self.kernel_size = to_pair(kernel_size)
        self.stride = to_pair(stride)
        self.padding = to_pair(padding)
        self.dilation = to_pair(dilation)
        self.groups = groups
        self.deformable_groups = deformable_groups
        n = in_channels * self.kernel_size[0] * self.kernel_size[1]
        stdv = 1.0 / math.sqrt(n)
        key = jax.random.PRNGKey(0) if key is None else key
        self.weight = jax.random.uniform(
            key,
            (out_channels, in_channels // groups, *self.kernel_size),
            jnp.float32, minval=-stdv, maxval=stdv)

    def __call__(self, x, offset, p_tile=None):
        return deform_conv_forward(x, offset, self.weight,
                                   stride=self.stride, padding=self.padding,
                                   dilation=self.dilation, groups=self.groups,
                                   deformable_groups=self.deformable_groups,
                                   p_tile=p_tile)


if __name__ == "__main__":
    key = jax.random.PRNGKey(0)
    kx, ko, kw = jax.random.split(key, 3)

    N, C_in, C_out, H, W = 2, 4, 8, 16, 16
    KH = KW = 3
    stride, padding, dilation = (1, 1), (1, 1), (1, 1)
    groups, deformable_groups = 1, 1

    conv = DeformConvPallas(C_in, C_out, (KH, KW), stride, padding, dilation,
                            groups, deformable_groups, key=kw)

    Ho = (H + 2 * padding[0] - (dilation[0] * (KH - 1) + 1)) // stride[0] + 1
    Wo = (W + 2 * padding[1] - (dilation[1] * (KW - 1) + 1)) // stride[1] + 1

    x = jax.random.normal(kx, (N, C_in, H, W), jnp.float32)
    offset = 0.5 * jax.random.normal(
        ko, (N, 2 * deformable_groups * KH * KW, Ho, Wo), jnp.float32)

    out = jax.block_until_ready(conv(x, offset))
    assert out.shape == (N, C_out, Ho, Wo), out.shape
    assert bool(jnp.all(jnp.isfinite(out)))

    # Sanity check: with zero offsets, deformable conv == ordinary conv.
    # The kernel feeds bf16 values/weights into the MXU with f32 accumulation,
    # so compare against a bf16-input / f32-accumulation convolution.
    ref = jax.lax.conv_general_dilated(
        x.astype(jnp.bfloat16), conv.weight.astype(jnp.bfloat16),
        window_strides=stride,
        padding=[(padding[0], padding[0]), (padding[1], padding[1])],
        rhs_dilation=dilation,
        dimension_numbers=("NCHW", "OIHW", "NCHW"),
        feature_group_count=groups,
        preferred_element_type=jnp.float32)
    out0 = jax.block_until_ready(conv(x, jnp.zeros_like(offset)))
    assert jnp.allclose(out0, ref, atol=1e-2, rtol=1e-2), \
        float(jnp.max(jnp.abs(out0 - ref)))

    # Exercise the multi-tile P path (P = 256 split into two 128-row tiles).
    out0_tiled = jax.block_until_ready(conv(x, jnp.zeros_like(offset), p_tile=128))
    assert jnp.allclose(out0_tiled, out0, atol=1e-5, rtol=1e-5)

    print("KERNEL_OK")
</pallas_src>

<mosaic_0001>
module attributes {stable_mosaic.version = 11 : i64} {
  func.func @_deform_conv_kernel(%arg0: i32, %arg1: i32, %arg2: i32, %arg3: memref<1x36x16xbf16, #tpu.memory_space<vmem>>, %arg4: memref<1x1x256x36xbf16, #tpu.memory_space<vmem>>, %arg5: memref<1x1x256x16xf32, #tpu.memory_space<vmem>>) attributes {dimension_semantics = [#tpu.dimension_semantics<parallel>, #tpu.dimension_semantics<parallel>, #tpu.dimension_semantics<parallel>], iteration_bounds = array<i64: 1, 2, 1>, scalar_prefetch = 0 : i64, scratch_operands = 0 : i64, tpu.core_type = #tpu.core_type<tc>, window_params = [{transform_indices = @transform_0, window_bounds = array<i64: 1, 36, 16>}, {transform_indices = @transform_1, window_bounds = array<i64: 1, 1, 256, 36>}, {transform_indices = @transform_2, window_bounds = array<i64: 1, 1, 256, 16>}]} {
    %c0 = arith.constant 0 : index
    %c0_0 = arith.constant 0 : index
    %c0_1 = arith.constant 0 : index
    %c0_2 = arith.constant 0 : index
    %0 = vector.load %arg4[%c0, %c0_0, %c0_1, %c0_2] : memref<1x1x256x36xbf16, #tpu.memory_space<vmem>>, vector<1x1x256x36xbf16>
    %1 = vector.shape_cast %0 : vector<1x1x256x36xbf16> to vector<256x36xbf16>
    %c0_3 = arith.constant 0 : index
    %c0_4 = arith.constant 0 : index
    %c0_5 = arith.constant 0 : index
    %2 = vector.load %arg3[%c0_3, %c0_4, %c0_5] : memref<1x36x16xbf16, #tpu.memory_space<vmem>>, vector<1x36x16xbf16>
    %3 = vector.shape_cast %2 : vector<1x36x16xbf16> to vector<36x16xbf16>
    %cst = arith.constant dense<0.000000e+00> : vector<256x16xf32>
    %4 = tpu.matmul %1, %3, %cst {dimension_numbers = #tpu.dot_dimension_numbers<[1], [0], [0], [1], [0, 0, 1, 1], [], []>} : vector<256x36xbf16>, vector<36x16xbf16>, vector<256x16xf32> -> vector<256x16xf32>
    %c0_6 = arith.constant 0 : index
    %c0_7 = arith.constant 0 : index
    %c0_8 = arith.constant 0 : index
    %c0_9 = arith.constant 0 : index
    %5 = vector.load %arg5[%c0_6, %c0_7, %c0_8, %c0_9] : memref<1x1x256x16xf32, #tpu.memory_space<vmem>>, vector<1x1x256x16xf32>
    %6 = vector.shape_cast %5 : vector<1x1x256x16xf32> to vector<256x16xf32>
    %7 = vector.shape_cast %4 : vector<256x16xf32> to vector<1x1x256x16xf32>
    tpu.vector_store %arg5[%c0_6, %c0_7, %c0_8, %c0_9], %7 {strides = array<i32>} : memref<1x1x256x16xf32, #tpu.memory_space<vmem>>, vector<1x1x256x16xf32>,
    return
  }
  func.func @transform_0(%arg0: i32, %arg1: i32, %arg2: i32) -> (i32, i32, i32) {
    %c0_i32 = arith.constant 0 : i32
    %c0_i32_0 = arith.constant 0 : i32
    %c0_i32_1 = arith.constant 0 : i32
    return %arg0, %c0_i32, %c0_i32_0 : i32, i32, i32
  }
  func.func @transform_1(%arg0: i32, %arg1: i32, %arg2: i32) -> (i32, i32, i32, i32) {
    %c0_i32 = arith.constant 0 : i32
    %c0_i32_0 = arith.constant 0 : i32
    return %arg1, %arg0, %arg2, %c0_i32 : i32, i32, i32, i32
  }
  func.func @transform_2(%arg0: i32, %arg1: i32, %arg2: i32) -> (i32, i32, i32, i32) {
    %c0_i32 = arith.constant 0 : i32
    %c0_i32_0 = arith.constant 0 : i32
    return %arg1, %arg0, %arg2, %c0_i32 : i32, i32, i32, i32
  }
}

</mosaic_0001>

<llo_original>
// kernel: deform_conv_forward.1
$region0: #{deform_conv_forward.1}
  #allocation0 [shape = 'u32[]', space=smem, size = 0x4, offset = 0x4, fixed_abs, tag = 'smem constant byte address 0x4 - core index']
  #allocation1 [shape = 'u32[72,128]{1,0:T(1,128)}', space=vmem, size = 0x9000, scoped, tag = 'internal scratch']
  %s0 = inlined_call_operand.vmem [shape: bf16[1,36,16], index: 0, kind: input, shape index: {}]
  %s1 = inlined_call_operand.vmem [shape: bf16[2,1,256,36], index: 1, kind: input, shape index: {}]
  %s2 = inlined_call_operand.vmem [shape: f32[2,1,256,16], index: 2, kind: output, shape index: {}]
  %s3 = sld [smem:[#allocation0]]
  $region41: #{deform_conv_forward.1} parent=0
    _
  %s5 = ssub.s32 1, %s3
  %s6 = scalar_select 0, %s5, %s3
  loop: start=0, step=1, limit=4
  $region2: #{deform_conv_forward.1} parent=0 // loop_pre_header
    _
  $region3: #{deform_conv_forward.1} parent=0 // loop_header
    %s8 = sphi 0, %s12
    %p9 = scmp.ge.s32.totalorder %s8, 4
    %s15 = sphi 0, %s34
    %s16 = sphi 0, %s30
    %s17 = sphi 0, %s26
    %s18 = sphi 0, %s15
    %s19 = sphi 0, %s16
    %s20 = sphi 0, %s17
    %s21 = sphi 0, %s18
    %s22 = sphi 0, %s19
    %s23 = sphi 0, %s20
    %s37 = sphi 0, %s39
    %s40 = sphi 0, %s37
    %s41 = sphi 0, %s40
    %s57 = sphi 0, %s41
    %s67 = sphi 0, %s69
    %s70 = sphi 0, %s67
    %s71 = sphi 0, %s70
    %s87 = sphi 0, %s71
    %s97 = sphi 0, %s99
    %s100 = sphi 0, %s97
    %s101 = sphi 0, %s100
    %s117 = sphi 0, %s101
  $region4: #{deform_conv_forward.1} parent=0 // loop_header_branch
    %11 = sbr.rel (%p9) target = $region8
  $region5: #{deform_conv_forward.1} parent=0 // loop_body
    %s13 = ssub.s32 %s8, 1
    %s14 = ssub.s32 %s8, 2
    %s24 = sadd.s32 1, %s17
    %p25 = scmp.ge.s32.totalorder %s24, 1
    %s26 = scalar_select %p25, 0, %s24
    %s27 = sadd.s32 1, %s16
    %s28 = scalar_select %p25, %s27, %s16
    %p29 = scmp.ge.s32.totalorder %s28, 2
    %s30 = scalar_select %p29, 0, %s28
    %s31 = sadd.s32 1, %s15
    %s32 = scalar_select %p29, %s31, %s15
    %p33 = scmp.ge.s32.totalorder %s32, 1
    %s34 = scalar_select %p33, 0, %s32
    %s35 = ssub.s32 %s15, %s34
    %p36 = scmp.eq.s32.totalorder %s35, 0
    %s38 = sadd.s32 %s37, 1
    %s39 = scalar_select %p36, %s37, %s38
    %p42 = pneg %p36
    %p43 = scmp.eq.s32.totalorder %s8, 1
    %p44 = por %p42, %p43
    %p45 = scmp.ne.s32.totalorder %s37, %s40
    %p46 = scmp.eq.s32.totalorder %s8, 0
    %p47 = por %p45, %p46
    %p48 = scmp.ne.s32.totalorder %s37, %s40
    %p49 = scmp.eq.s32.totalorder %s13, 1
    %p50 = por %p48, %p49
    %p51 = scmp.ne.s32.totalorder %s40, %s41
    %p52 = scmp.eq.s32.totalorder %s13, 0
    %p53 = por %p51, %p52
    %p54 = scmp.ne.s32.totalorder %s40, %s41
    %p55 = scmp.eq.s32.totalorder %s14, 1
    %p56 = por %p54, %p55
    %p58 = scmp.ne.s32.totalorder %s41, %s57
    %p59 = scmp.eq.s32.totalorder %s14, 0
    %p60 = por %p58, %p59
    %s61 = ssub.s32 %s16, %s30
    %s62 = ssub.s32 %s15, %s34
    %s63 = sor.u32 %s61, %s62
    %s64 = ssub.s32 %s17, %s26
    %s65 = sor.u32 %s63, %s64
    %p66 = scmp.eq.s32.totalorder %s65, 0
    %s68 = sadd.s32 %s67, 1
    %s69 = scalar_select %p66, %s67, %s68
    %p72 = pneg %p66
    %p73 = scmp.eq.s32.totalorder %s8, 1
    %p74 = por %p72, %p73
    %p75 = scmp.ne.s32.totalorder %s67, %s70
    %p76 = scmp.eq.s32.totalorder %s8, 0
    %p77 = por %p75, %p76
    %p78 = scmp.ne.s32.totalorder %s67, %s70
    %p79 = scmp.eq.s32.totalorder %s13, 1
    %p80 = por %p78, %p79
    %p81 = scmp.ne.s32.totalorder %s70, %s71
    %p82 = scmp.eq.s32.totalorder %s13, 0
    %p83 = por %p81, %p82
    %p84 = scmp.ne.s32.totalorder %s70, %s71
    %p85 = scmp.eq.s32.totalorder %s14, 1
    %p86 = por %p84, %p85
    %p88 = scmp.ne.s32.totalorder %s71, %s87
    %p89 = scmp.eq.s32.totalorder %s14, 0
    %p90 = por %p88, %p89
    %s91 = ssub.s32 %s16, %s30
    %s92 = ssub.s32 %s15, %s34
    %s93 = sor.u32 %s91, %s92
    %s94 = ssub.s32 %s17, %s26
    %s95 = sor.u32 %s93, %s94
    %p96 = scmp.eq.s32.totalorder %s95, 0
    %s98 = sadd.s32 %s97, 1
    %s99 = scalar_select %p96, %s97, %s98
    %p102 = pneg %p96
    %p103 = scmp.eq.s32.totalorder %s8, 1
    %p104 = por %p102, %p103
    %p105 = scmp.ne.s32.totalorder %s97, %s100
    %p106 = scmp.eq.s32.totalorder %s8, 0
    %p107 = por %p105, %p106
    %p108 = scmp.ne.s32.totalorder %s97, %s100
    %p109 = scmp.eq.s32.totalorder %s13, 1
    %p110 = por %p108, %p109
    %p111 = scmp.ne.s32.totalorder %s100, %s101
    %p112 = scmp.eq.s32.totalorder %s13, 0
    %p113 = por %p111, %p112
    %p114 = scmp.ne.s32.totalorder %s100, %s101
    %p115 = scmp.eq.s32.totalorder %s14, 1
    %p116 = por %p114, %p115
    %p118 = scmp.ne.s32.totalorder %s101, %s117
    %p119 = scmp.eq.s32.totalorder %s14, 0
    %p120 = por %p118, %p119
    %p121 = scmp.le.s32.totalorder 1, %s8
    %p122 = scmp.lt.s32.totalorder %s8, 3
    %p123 = pnand %p121, %p122
    %p124 = pneg %p123
    // Predicated region
    $region9: #{deform_conv_forward.1} parent=5 // pred_check
      _
    $region10: #{deform_conv_forward.1} parent=5 // pred_check_branch
      %126 = sbr.rel (%p123) target = $region12
    $region11: #{deform_conv_forward.1} parent=5 // pred_region
      %s127 = ssub.s32 %s8, 1
      // Predicated region
      $region13: #{deform_conv_forward.1} parent=11 // pred_check
        %p128 = pneg %p53
      $region14: #{deform_conv_forward.1} parent=11 // pred_check_branch
        %130 = sbr.rel (%p128) target = $region16
      $region15: #{deform_conv_forward.1} parent=11 // pred_region
        %p131 = scmp.lt.s32.totalorder %s18, 0
        %s132 = scalar_select %p131, %s18, 0
        %s133 = smul.addr %s132, 5
        %s134 = smul.addr %s133, 4
        %s135 = scalar_lea.vmem %s0, %s134
      $region16: #{deform_conv_forward.1} parent=11 // pred_fallthru
        _
    $region12: #{deform_conv_forward.1} parent=5 // pred_fallthru
      _
    %p136 = scmp.lt.s32.totalorder %s8, 2
    // Predicated region
    $region17: #{deform_conv_forward.1} parent=5 // pred_check
      %p137 = pneg %p136
    $region18: #{deform_conv_forward.1} parent=5 // pred_check_branch
      %139 = sbr.rel (%p137) target = $region20
    $region19: #{deform_conv_forward.1} parent=5 // pred_region
      // Predicated region
      $region21: #{deform_conv_forward.1} parent=19 // pred_check
        %p140 = pneg %p77
      $region22: #{deform_conv_forward.1} parent=19 // pred_check_branch
        %142 = sbr.rel (%p140) target = $region24
      $region23: #{deform_conv_forward.1} parent=19 // pred_region
        %s143 = smul.u32 32, %s17
        %p144 = scmp.lt.s32.totalorder %s16, 1
        %s145 = scalar_select %p144, %s16, 1
        %p146 = scmp.lt.s32.totalorder %s15, 0
        %s147 = scalar_select %p146, %s15, 0
        %p148 = scmp.lt.s32.totalorder %s143, 31
        %s149 = scalar_select %p148, %s143, 31
        %s150 = smul.addr %s147, 32
        %s151 = sadd.s32 %s149, %s150
        %s152 = smul.addr %s145, 32
        %s153 = sadd.s32 %s151, %s152
        %s154 = smul.addr %s153, 4
        %s155 = scalar_lea.vmem %s1, %s154
        %s156 = smul.u32 32, %s17
      $region24: #{deform_conv_forward.1} parent=19 // pred_fallthru
        _
    $region20: #{deform_conv_forward.1} parent=5 // pred_fallthru
      _
    %p157 = scmp.le.s32.totalorder 1, %s8
    %p158 = scmp.lt.s32.totalorder %s8, 3
    %p159 = pnand %p157, %p158
    %p160 = pneg %p159
    // Predicated region
    $region25: #{deform_conv_forward.1} parent=5 // pred_check
      _
    $region26: #{deform_conv_forward.1} parent=5 // pred_check_branch
      %162 = sbr.rel (%p159) target = $region28
    $region27: #{deform_conv_forward.1} parent=5 // pred_region
      %s163 = ssub.s32 %s8, 1
      %p164 = scmp.lt.s32.totalorder %s18, 0
      %s165 = scalar_select %p164, %s18, 0
      %s166 = smul.addr %s165, 5
      %s167 = smul.addr %s166, 4
      %s168 = scalar_lea.vmem %s0, %s167
      %p169 = pneg %p53
      %p170 = pneg %p50
      %s171 = smul.u32 32, %s20
      %p172 = scmp.lt.s32.totalorder %s19, 1
      %s173 = scalar_select %p172, %s19, 1
      %p174 = scmp.lt.s32.totalorder %s18, 0
      %s175 = scalar_select %p174, %s18, 0
      %p176 = scmp.lt.s32.totalorder %s171, 31
      %s177 = scalar_select %p176, %s171, 31
      %s178 = smul.addr %s175, 32
      %s179 = sadd.s32 %s177, %s178
      %s180 = smul.addr %s173, 32
      %s181 = sadd.s32 %s179, %s180
      %s182 = smul.addr %s181, 4
      %s183 = scalar_lea.vmem %s1, %s182
      %p184 = pneg %p83
      %p185 = pneg %p80
      %p186 = pneg %p113
      %p187 = pneg %p110
      %s188 = smul.u32 32, %s20
      %p189 = scmp.lt.s32.totalorder %s19, 1
      %s190 = scalar_select %p189, %s19, 1
      %p191 = scmp.lt.s32.totalorder %s18, 0
      %s192 = scalar_select %p191, %s18, 0
      %p193 = scmp.lt.s32.totalorder %s188, 31
      %s194 = scalar_select %p193, %s188, 31
      %s195 = smul.addr %s192, 32
      %s196 = sadd.s32 %s194, %s195
      %s197 = smul.addr %s190, 32
      %s198 = sadd.s32 %s196, %s197
      %s199 = smul.addr %s198, 8
      %s200 = scalar_lea.vmem %s2, %s199
      %p201 = scmp.lt.s32.totalorder %s18, 0
      %s202 = scalar_select %p201, %s18, 0
      %s203 = smul.addr %s202, 5
      %s204 = smul.addr %s203, 4
      %s205 = scalar_lea.vmem %s0, %s204
      %s206 = smul.u32 32, %s20
      %p207 = scmp.lt.s32.totalorder %s19, 1
      %s208 = scalar_select %p207, %s19, 1
      %p209 = scmp.lt.s32.totalorder %s18, 0
      %s210 = scalar_select %p209, %s18, 0
      %p211 = scmp.lt.s32.totalorder %s206, 31
      %s212 = scalar_select %p211, %s206, 31
      %s213 = smul.addr %s210, 32
      %s214 = sadd.s32 %s212, %s213
      %s215 = smul.addr %s208, 32
      %s216 = sadd.s32 %s214, %s215
      %s217 = smul.addr %s216, 4
      %s218 = scalar_lea.vmem %s1, %s217
      %s219 = smul.u32 32, %s20
      %s220 = smul.u32 32, %s20
      %p221 = scmp.lt.s32.totalorder %s19, 1
      %s222 = scalar_select %p221, %s19, 1
      %p223 = scmp.lt.s32.totalorder %s18, 0
      %s224 = scalar_select %p223, %s18, 0
      %p225 = scmp.lt.s32.totalorder %s220, 31
      %s226 = scalar_select %p225, %s220, 31
      %s227 = smul.addr %s224, 32
      %s228 = sadd.s32 %s226, %s227
      %s229 = smul.addr %s222, 32
      %s230 = sadd.s32 %s228, %s229
      %s231 = smul.addr %s230, 8
      %s232 = scalar_lea.vmem %s2, %s231
      %s233 = smul.u32 32, %s20
      %v235 = vld [vmem:[%s218] sm:$0xf]
      %v236 = vld [vmem:[%s218 + $0x4] sm:$0xf]
      %v237 = vld [vmem:[%s218 + $0x8] sm:$0xf]
      %v238 = vld [vmem:[%s218 + $0xc] sm:$0xf]
      %v239 = vld [vmem:[%s218 + $0x10] sm:$0xf]
      %v240 = vld [vmem:[%s218 + $0x14] sm:$0xf]
      %v241 = vld [vmem:[%s218 + $0x18] sm:$0xf]
      %v242 = vld [vmem:[%s218 + $0x1c] sm:$0xf]
      %v243 = vld [vmem:[%s218 + $0x20] sm:$0xf]
      %v244 = vld [vmem:[%s218 + $0x24] sm:$0xf]
      %v245 = vld [vmem:[%s218 + $0x28] sm:$0xf]
      %v246 = vld [vmem:[%s218 + $0x2c] sm:$0xf]
      %v247 = vld [vmem:[%s218 + $0x30] sm:$0xf]
      %v248 = vld [vmem:[%s218 + $0x34] sm:$0xf]
      %v249 = vld [vmem:[%s218 + $0x38] sm:$0xf]
      %v250 = vld [vmem:[%s218 + $0x3c] sm:$0xf]
      %v251 = vld [vmem:[%s218 + $0x40] sm:$0xf]
      %v252 = vld [vmem:[%s218 + $0x44] sm:$0xf]
      %v253 = vld [vmem:[%s218 + $0x48] sm:$0xf]
      %v254 = vld [vmem:[%s218 + $0x4c] sm:$0xf]
      %v255 = vld [vmem:[%s218 + $0x50] sm:$0xf]
      %v256 = vld [vmem:[%s218 + $0x54] sm:$0xf]
      %v257 = vld [vmem:[%s218 + $0x58] sm:$0xf]
      %v258 = vld [vmem:[%s218 + $0x5c] sm:$0xf]
      %v259 = vld [vmem:[%s218 + $0x60] sm:$0xf]
      %v260 = vld [vmem:[%s218 + $0x64] sm:$0xf]
      %v261 = vld [vmem:[%s218 + $0x68] sm:$0xf]
      %v262 = vld [vmem:[%s218 + $0x6c] sm:$0xf]
      %v263 = vld [vmem:[%s218 + $0x70] sm:$0xf]
      %v264 = vld [vmem:[%s218 + $0x74] sm:$0xf]
      %v265 = vld [vmem:[%s218 + $0x78] sm:$0xf]
      %v266 = vld [vmem:[%s218 + $0x7c] sm:$0xf]
      %v267 = vld [vmem:[%s205] sm:$0xf]
      %v268 = vld [vmem:[%s205 + $0x4] sm:$0xf]
      %v269 = vld [vmem:[%s205 + $0x8] sm:$0xf]
      %v270 = vld [vmem:[%s205 + $0xc] sm:$0xf]
      %v271 = vld [vmem:[%s205 + $0x10] sm:$0x3]
      %v304 = vunpack.c.l.b16 %v235
      %v305 = vunpack.c.l.b16 %v236
      %v306 = vunpack.c.l.b16 %v237
      %v307 = vunpack.c.l.b16 %v238
      %v308 = vunpack.c.l.b16 %v239
      %v309 = vunpack.c.l.b16 %v240
      %v310 = vunpack.c.l.b16 %v241
      %v311 = vunpack.c.l.b16 %v242
      %v312 = vunpack.c.l.b16 %v243
      %v313 = vunpack.c.l.b16 %v244
      %v314 = vunpack.c.l.b16 %v245
      %v315 = vunpack.c.l.b16 %v246
      %v316 = vunpack.c.l.b16 %v247
      %v317 = vunpack.c.l.b16 %v248
      %v318 = vunpack.c.l.b16 %v249
      %v319 = vunpack.c.l.b16 %v250
      %v320 = vunpack.c.l.b16 %v251
      %v321 = vunpack.c.l.b16 %v252
      %v322 = vunpack.c.l.b16 %v253
      %v323 = vunpack.c.l.b16 %v254
      %v324 = vunpack.c.l.b16 %v255
      %v325 = vunpack.c.l.b16 %v256
      %v326 = vunpack.c.l.b16 %v257
      %v327 = vunpack.c.l.b16 %v258
      %v328 = vunpack.c.l.b16 %v259
      %v329 = vunpack.c.l.b16 %v260
      %v330 = vunpack.c.l.b16 %v261
      %v331 = vunpack.c.l.b16 %v262
      %v332 = vunpack.c.l.b16 %v263
      %v333 = vunpack.c.l.b16 %v264
      %v334 = vunpack.c.l.b16 %v265
      %v335 = vunpack.c.l.b16 %v266
      %v336 = vpack.c.b16 %v305, %v304
      %v337 = vpack.c.b16 %v307, %v306
      %v338 = vpack.c.b16 %v309, %v308
      %v339 = vpack.c.b16 %v311, %v310
      %v340 = vpack.c.b16 %v313, %v312
      %v341 = vpack.c.b16 %v315, %v314
      %v342 = vpack.c.b16 %v317, %v316
      %v343 = vpack.c.b16 %v319, %v318
      %v344 = vpack.c.b16 %v321, %v320
      %v345 = vpack.c.b16 %v323, %v322
      %v346 = vpack.c.b16 %v325, %v324
      %v347 = vpack.c.b16 %v327, %v326
      %v348 = vpack.c.b16 %v329, %v328
      %v349 = vpack.c.b16 %v331, %v330
      %v350 = vpack.c.b16 %v333, %v332
      %v351 = vpack.c.b16 %v335, %v334
      %v357 = vunpack.c.l.b16 %v267
      %v358 = vunpack.c.l.b16 %v268
      %v359 = vunpack.c.l.b16 %v269
      %v360 = vunpack.c.l.b16 %v270
      %v361 = vunpack.c.l.b16 %v271
      %v362 = vpack.c.b16 %v358, %v357
      %v363 = vpack.c.b16 %v360, %v359
      %v364 = vpack.c.b16 %v361, %v361
      %vm367 = vcmask 293888
      %v369 = vsel %vm367, %v336, 0
      %v372 = vsel %vm367, %v337, 0
      %v375 = vsel %vm367, %v338, 0
      %v378 = vsel %vm367, %v339, 0
      %v381 = vsel %vm367, %v340, 0
      %v384 = vsel %vm367, %v341, 0
      %v387 = vsel %vm367, %v342, 0
      %v390 = vsel %vm367, %v343, 0
      %v393 = vsel %vm367, %v344, 0
      %v396 = vsel %vm367, %v345, 0
      %v399 = vsel %vm367, %v346, 0
      %v402 = vsel %vm367, %v347, 0
      %v405 = vsel %vm367, %v348, 0
      %v408 = vsel %vm367, %v349, 0
      %v411 = vsel %vm367, %v350, 0
      %v414 = vsel %vm367, %v351, 0
      %vm416 = vcmask 1041408
      %v418 = vsel %vm416, %v364, 0
      %420 = vmatpush.bf16.msra.mxu0 0
      %421 = vmatpush.bf16.msra.mxu0 0
      %422 = vmatpush.bf16.msra.mxu0 0
      %423 = vmatpush.bf16.msra.mxu0 0
      %424 = vmatpush.bf16.msra.mxu0 0
      %425 = vmatpush.bf16.msra.mxu0 %v418
      %426 = vmatpush.bf16.msra.mxu0 %v363
      %427 = vmatpush.bf16.msra.mxu0 %v362
      %428 = vmatmul.bf16.gmra.mxu0 %v369
      %v429 = vpop.f32.mrf.mxu0
      %v430 = vadd.f32 0.0, %v429
      %v431 = vpop.f32.mrf.mxu0
      %v432 = vadd.f32 0.0, %v431
      %433 = vmatmul.bf16.gmra.mxu0 %v372
      %v434 = vpop.f32.mrf.mxu0
      %v435 = vadd.f32 0.0, %v434
      %v436 = vpop.f32.mrf.mxu0
      %v437 = vadd.f32 0.0, %v436
      %438 = vmatmul.bf16.gmra.mxu0 %v375
      %v439 = vpop.f32.mrf.mxu0
      %v440 = vadd.f32 0.0, %v439
      %v441 = vpop.f32.mrf.mxu0
      %v442 = vadd.f32 0.0, %v441
      %443 = vmatmul.bf16.gmra.mxu0 %v378
      %v444 = vpop.f32.mrf.mxu0
      %v445 = vadd.f32 0.0, %v444
      %v446 = vpop.f32.mrf.mxu0
      %v447 = vadd.f32 0.0, %v446
      %448 = vmatmul.bf16.gmra.mxu0 %v381
      %v449 = vpop.f32.mrf.mxu0
      %v450 = vadd.f32 0.0, %v449
      %v451 = vpop.f32.mrf.mxu0
      %v452 = vadd.f32 0.0, %v451
      %453 = vmatmul.bf16.gmra.mxu0 %v384
      %v454 = vpop.f32.mrf.mxu0
      %v455 = vadd.f32 0.0, %v454
      %v456 = vpop.f32.mrf.mxu0
      %v457 = vadd.f32 0.0, %v456
      %458 = vmatmul.bf16.gmra.mxu0 %v387
      %v459 = vpop.f32.mrf.mxu0
      %v460 = vadd.f32 0.0, %v459
      %v461 = vpop.f32.mrf.mxu0
      %v462 = vadd.f32 0.0, %v461
      %463 = vmatmul.bf16.gmra.mxu0 %v390
      %v464 = vpop.f32.mrf.mxu0
      %v465 = vadd.f32 0.0, %v464
      %v466 = vpop.f32.mrf.mxu0
      %v467 = vadd.f32 0.0, %v466
      %468 = vmatmul.bf16.gmra.mxu0 %v393
      %v469 = vpop.f32.mrf.mxu0
      %v470 = vadd.f32 0.0, %v469
      %v471 = vpop.f32.mrf.mxu0
      %v472 = vadd.f32 0.0, %v471
      %473 = vmatmul.bf16.gmra.mxu0 %v396
      %v474 = vpop.f32.mrf.mxu0
      %v475 = vadd.f32 0.0, %v474
      %v476 = vpop.f32.mrf.mxu0
      %v477 = vadd.f32 0.0, %v476
      %478 = vmatmul.bf16.gmra.mxu0 %v399
      %v479 = vpop.f32.mrf.mxu0
      %v480 = vadd.f32 0.0, %v479
      %v481 = vpop.f32.mrf.mxu0
      %v482 = vadd.f32 0.0, %v481
      %483 = vmatmul.bf16.gmra.mxu0 %v402
      %v484 = vpop.f32.mrf.mxu0
      %v485 = vadd.f32 0.0, %v484
      %v486 = vpop.f32.mrf.mxu0
      %v487 = vadd.f32 0.0, %v486
      %488 = vmatmul.bf16.gmra.mxu0 %v405
      %v489 = vpop.f32.mrf.mxu0
      %v490 = vadd.f32 0.0, %v489
      %v491 = vpop.f32.mrf.mxu0
      %v492 = vadd.f32 0.0, %v491
      %493 = vmatmul.bf16.gmra.mxu0 %v408
      %v494 = vpop.f32.mrf.mxu0
      %v495 = vadd.f32 0.0, %v494
      %v496 = vpop.f32.mrf.mxu0
      %v497 = vadd.f32 0.0, %v496
      %498 = vmatmul.bf16.gmra.mxu0 %v411
      %v499 = vpop.f32.mrf.mxu0
      %v500 = vadd.f32 0.0, %v499
      %v501 = vpop.f32.mrf.mxu0
      %v502 = vadd.f32 0.0, %v501
      %503 = vmatmul.bf16.gmra.mxu0 %v414
      %v504 = vpop.f32.mrf.mxu0
      %v505 = vadd.f32 0.0, %v504
      %v506 = vpop.f32.mrf.mxu0
      %v507 = vadd.f32 0.0, %v506
      %508 = vdwg.mxu0
      %vm509 = vcmask 130048
      %510 = vst.msk [vmem:[%s232] sm:$0xff] %vm509, %v430
      %511 = vst.msk [vmem:[%s232 + $0x8] sm:$0xff] %vm509, %v432
      %512 = vst.msk [vmem:[%s232 + $0x10] sm:$0xff] %vm509, %v435
      %513 = vst.msk [vmem:[%s232 + $0x18] sm:$0xff] %vm509, %v437
      %514 = vst.msk [vmem:[%s232 + $0x20] sm:$0xff] %vm509, %v440
      %515 = vst.msk [vmem:[%s232 + $0x28] sm:$0xff] %vm509, %v442
      %516 = vst.msk [vmem:[%s232 + $0x30] sm:$0xff] %vm509, %v445
      %517 = vst.msk [vmem:[%s232 + $0x38] sm:$0xff] %vm509, %v447
      %518 = vst.msk [vmem:[%s232 + $0x40] sm:$0xff] %vm509, %v450
      %519 = vst.msk [vmem:[%s232 + $0x48] sm:$0xff] %vm509, %v452
      %520 = vst.msk [vmem:[%s232 + $0x50] sm:$0xff] %vm509, %v455
      %521 = vst.msk [vmem:[%s232 + $0x58] sm:$0xff] %vm509, %v457
      %522 = vst.msk [vmem:[%s232 + $0x60] sm:$0xff] %vm509, %v460
      %523 = vst.msk [vmem:[%s232 + $0x68] sm:$0xff] %vm509, %v462
      %524 = vst.msk [vmem:[%s232 + $0x70] sm:$0xff] %vm509, %v465
      %525 = vst.msk [vmem:[%s232 + $0x78] sm:$0xff] %vm509, %v467
      %526 = vst.msk [vmem:[%s232 + $0x80] sm:$0xff] %vm509, %v470
      %527 = vst.msk [vmem:[%s232 + $0x88] sm:$0xff] %vm509, %v472
      %528 = vst.msk [vmem:[%s232 + $0x90] sm:$0xff] %vm509, %v475
      %529 = vst.msk [vmem:[%s232 + $0x98] sm:$0xff] %vm509, %v477
      %530 = vst.msk [vmem:[%s232 + $0xa0] sm:$0xff] %vm509, %v480
      %531 = vst.msk [vmem:[%s232 + $0xa8] sm:$0xff] %vm509, %v482
      %532 = vst.msk [vmem:[%s232 + $0xb0] sm:$0xff] %vm509, %v485
      %533 = vst.msk [vmem:[%s232 + $0xb8] sm:$0xff] %vm509, %v487
      %534 = vst.msk [vmem:[%s232 + $0xc0] sm:$0xff] %vm509, %v490
      %535 = vst.msk [vmem:[%s232 + $0xc8] sm:$0xff] %vm509, %v492
      %536 = vst.msk [vmem:[%s232 + $0xd0] sm:$0xff] %vm509, %v495
      %537 = vst.msk [vmem:[%s232 + $0xd8] sm:$0xff] %vm509, %v497
      %538 = vst.msk [vmem:[%s232 + $0xe0] sm:$0xff] %vm509, %v500
      %539 = vst.msk [vmem:[%s232 + $0xe8] sm:$0xff] %vm509, %v502
      %540 = vst.msk [vmem:[%s232 + $0xf0] sm:$0xff] %vm509, %v505
      %541 = vst.msk [vmem:[%s232 + $0xf8] sm:$0xff] %vm509, %v507
      %s542 = smul.u32 32, %s20
      %p543 = scmp.lt.s32.totalorder %s19, 1
      %s544 = scalar_select %p543, %s19, 1
      %p545 = scmp.lt.s32.totalorder %s18, 0
      %s546 = scalar_select %p545, %s18, 0
      %p547 = scmp.lt.s32.totalorder %s542, 31
      %s548 = scalar_select %p547, %s542, 31
      %s549 = smul.addr %s546, 32
      %s550 = sadd.s32 %s548, %s549
      %s551 = smul.addr %s544, 32
      %s552 = sadd.s32 %s550, %s551
      %s553 = smul.addr %s552, 8
      %s554 = scalar_lea.vmem %s2, %s553
      // Predicated region
      $region29: #{deform_conv_forward.1} parent=27 // pred_check
        %p555 = pneg %p110
      $region30: #{deform_conv_forward.1} parent=27 // pred_check_branch
        %557 = sbr.rel (%p555) target = $region32
      $region31: #{deform_conv_forward.1} parent=27 // pred_region
        %s558 = smul.u32 32, %s20
      $region32: #{deform_conv_forward.1} parent=27 // pred_fallthru
        _
    $region28: #{deform_conv_forward.1} parent=5 // pred_fallthru
      _
    %p559 = scmp.le.s32.totalorder 2, %s8
    // Predicated region
    $region33: #{deform_conv_forward.1} parent=5 // pred_check
      %p560 = pneg %p559
    $region34: #{deform_conv_forward.1} parent=5 // pred_check_branch
      %562 = sbr.rel (%p560) target = $region36
    $region35: #{deform_conv_forward.1} parent=5 // pred_region
      %s563 = ssub.s32 %s8, 2
      // Predicated region
      $region37: #{deform_conv_forward.1} parent=35 // pred_check
        %p564 = pneg %p116
      $region38: #{deform_conv_forward.1} parent=35 // pred_check_branch
        %566 = sbr.rel (%p564) target = $region40
      $region39: #{deform_conv_forward.1} parent=35 // pred_region
        %s567 = smul.u32 32, %s23
        %p568 = scmp.lt.s32.totalorder %s22, 1
        %s569 = scalar_select %p568, %s22, 1
        %p570 = scmp.lt.s32.totalorder %s21, 0
        %s571 = scalar_select %p570, %s21, 0
        %p572 = scmp.lt.s32.totalorder %s567, 31
        %s573 = scalar_select %p572, %s567, 31
        %s574 = smul.addr %s571, 32
        %s575 = sadd.s32 %s573, %s574
        %s576 = smul.addr %s569, 32
        %s577 = sadd.s32 %s575, %s576
        %s578 = smul.addr %s577, 8
        %s579 = scalar_lea.vmem %s2, %s578
      $region40: #{deform_conv_forward.1} parent=35 // pred_fallthru
        _
    $region36: #{deform_conv_forward.1} parent=5 // pred_fallthru
      _
  $region6: #{deform_conv_forward.1} parent=0 // loop_footer
    %s12 = sadd.s32 1, %s8
  $region7: #{deform_conv_forward.1} parent=0 // loop_footer_branch
    %7 = sbr.rel target = $region3
  $region8: #{deform_conv_forward.1} parent=0 // loop_exit
    _

</llo_original>
